<compile_context>
chip_gen: v5e
topology: v5e:2x2
jax: 0.10.0
libtpu: 0.0.40
codegen_flags: <defaults>
</compile_context>

<pallas_src>
from functools import partial

import numpy as np
import jax
import jax.numpy as jnp
from jax.experimental import pallas as pl
from jax.experimental.pallas import tpu as pltpu


def _round_up(n: int, m: int) -> int:
    return ((n + m - 1) // m) * m


def _segment_sum_kernel(x_ref, s_ref, o_ref):
    # x_ref: [tm, K_pad]   flattened (channel-major) input rows for this batch tile
    # s_ref: [K_pad, O_pad] constant 0/1 segment-selection matrix (VMEM resident)
    # o_ref: [tm, O_pad]   lane-dense padded output tile
    o_ref[...] = jnp.dot(
        x_ref[...], s_ref[...], preferred_element_type=jnp.float32
    ).astype(o_ref.dtype)


@partial(jax.jit, static_argnames=("in_length", "out_length"))
def receiver1d_forward(x, in_length: int, out_length: int):
    """x: [B, C, L] float32 -> [B, out_length] float32 (Receiver1D.forward)."""
    B, C, L = x.shape
    if L != in_length:
        raise ValueError(f"Expected in_length={in_length}, got {L}.")

    seg = L // out_length
    eff = out_length * seg
    if L % out_length != 0:
        start = L // 2 - eff // 2          # center crop (static Python ints)
        x = x[:, :, start:start + eff]

    # Flatten channel-major, exactly like reshaping the cropped [B, C, eff].
    K = C * eff
    x2 = x.reshape(B, K).astype(jnp.float32)

    # ---- padding for TPU layout ---------------------------------------------
    O_pad = _round_up(max(out_length, 128), 128)   # lane-dense output width
    K_pad = _round_up(K, 128)                      # aligned contraction dim
    tm = min(128, _round_up(B, 8))                 # batch tile (sublane aligned)
    B_pad = _round_up(B, tm)

    x2 = jnp.pad(x2, ((0, B_pad - B), (0, K_pad - K)))

    # Constant segment-selection matrix: S[c*eff + l, j] = 1 iff l // seg == j.
    # Built with numpy -> baked as a constant, zero rows/cols in the padding.
    seg_ids = np.tile(np.repeat(np.arange(out_length), seg), C)   # [K]
    S = np.zeros((K_pad, O_pad), dtype=np.float32)
    S[np.arange(K), seg_ids] = 1.0
    S = jnp.asarray(S)

    out = pl.pallas_call(
        _segment_sum_kernel,
        out_shape=jax.ShapeDtypeStruct((B_pad, O_pad), jnp.float32),
        grid=(B_pad // tm,),
        in_specs=[
            pl.BlockSpec((tm, K_pad), lambda i: (i, 0)),      # batch-tiled input
            pl.BlockSpec((K_pad, O_pad), lambda i: (0, 0)),   # resident S
        ],
        out_specs=pl.BlockSpec((tm, O_pad), lambda i: (i, 0)),
        compiler_params=pltpu.CompilerParams(
            dimension_semantics=("parallel",),                # megacore / v7x 2-TC
        ),
    )(x2, S)

    return out[:B, :out_length]


def _receiver1d_ref(x, out_length: int):
    """Pure-JAX reference with identical semantics to the PyTorch module."""
    B, C, L = x.shape
    seg = L // out_length
    eff = out_length * seg
    if L % out_length != 0:
        start = L // 2 - eff // 2
        x = x[:, :, start:start + eff]
    xr = x.reshape(B, C, out_length, seg)
    return xr.sum(axis=(1, 3))


if __name__ == "__main__":
    key = jax.random.PRNGKey(0)
    k1, k2, k3 = jax.random.split(key, 3)

    # Case 1: evenly divisible length (no crop).  x: [2, 4, 16], out_length=8.
    x_a = jax.random.normal(k1, (2, 4, 16), dtype=jnp.float32)
    out_a = receiver1d_forward(x_a, in_length=16, out_length=8)
    jax.block_until_ready(out_a)
    ref_a = _receiver1d_ref(x_a, 8)
    assert out_a.shape == (2, 8)
    assert jnp.allclose(out_a, ref_a, atol=1e-5, rtol=1e-5)

    # Case 2: non-divisible length -> center crop, single channel (squeeze path).
    x_b = jax.random.normal(k2, (2, 1, 19), dtype=jnp.float32)
    out_b = receiver1d_forward(x_b, in_length=19, out_length=4)
    jax.block_until_ready(out_b)
    ref_b = _receiver1d_ref(x_b, 4)
    assert out_b.shape == (2, 4)
    assert jnp.allclose(out_b, ref_b, atol=1e-5, rtol=1e-5)

    # Case 3: larger batch -> exercises the multi-tile "parallel" batch grid.
    x_c = jax.random.normal(k3, (256, 4, 16), dtype=jnp.float32)
    out_c = receiver1d_forward(x_c, in_length=16, out_length=8)
    jax.block_until_ready(out_c)
    ref_c = _receiver1d_ref(x_c, 8)
    assert out_c.shape == (256, 8)
    assert jnp.allclose(out_c, ref_c, atol=1e-4, rtol=1e-5)

    print("KERNEL_OK")
</pallas_src>

<mosaic_0001>
module attributes {stable_mosaic.version = 11 : i64} {
  func.func @_segment_sum_kernel(%arg0: i32, %arg1: memref<8x128xf32, #tpu.memory_space<vmem>>, %arg2: memref<128x128xf32, #tpu.memory_space<vmem>>, %arg3: memref<8x128xf32, #tpu.memory_space<vmem>>) attributes {dimension_semantics = [#tpu.dimension_semantics<parallel>], iteration_bounds = array<i64: 1>, scalar_prefetch = 0 : i64, scratch_operands = 0 : i64, tpu.core_type = #tpu.core_type<tc>, window_params = [{transform_indices = @transform_0, window_bounds = array<i64: 8, 128>}, {pipeline_mode = #tpu.pipeline_mode<synchronous>, transform_indices = @transform_1, window_bounds = array<i64: 128, 128>}, {transform_indices = @transform_2, window_bounds = array<i64: 8, 128>}]} {
    %c0 = arith.constant 0 : index
    %c0_0 = arith.constant 0 : index
    %0 = vector.load %arg1[%c0, %c0_0] : memref<8x128xf32, #tpu.memory_space<vmem>>, vector<8x128xf32>
    %c0_1 = arith.constant 0 : index
    %c0_2 = arith.constant 0 : index
    %1 = vector.load %arg2[%c0_1, %c0_2] : memref<128x128xf32, #tpu.memory_space<vmem>>, vector<128x128xf32>
    %cst = arith.constant dense<0.000000e+00> : vector<8x128xf32>
    %2 = tpu.matmul %0, %1, %cst {dimension_numbers = #tpu.dot_dimension_numbers<[1], [0], [0], [1], [0, 0, 1, 1], [], []>} : vector<8x128xf32>, vector<128x128xf32>, vector<8x128xf32> -> vector<8x128xf32>
    %c0_3 = arith.constant 0 : index
    %c0_4 = arith.constant 0 : index
    %3 = vector.load %arg3[%c0_3, %c0_4] : memref<8x128xf32, #tpu.memory_space<vmem>>, vector<8x128xf32>
    tpu.vector_store %arg3[%c0_3, %c0_4], %2 {strides = array<i32>} : memref<8x128xf32, #tpu.memory_space<vmem>>, vector<8x128xf32>,
    return
  }
  func.func @transform_0(%arg0: i32) -> (i32, i32) {
    %c0_i32 = arith.constant 0 : i32
    %c0_i32_0 = arith.constant 0 : i32
    return %arg0, %c0_i32 : i32, i32
  }
  func.func @transform_1(%arg0: i32) -> (i32, i32) {
    %c0_i32 = arith.constant 0 : i32
    %c0_i32_0 = arith.constant 0 : i32
    %c0_i32_1 = arith.constant 0 : i32
    return %c0_i32, %c0_i32_0 : i32, i32
  }
  func.func @transform_2(%arg0: i32) -> (i32, i32) {
    %c0_i32 = arith.constant 0 : i32
    %c0_i32_0 = arith.constant 0 : i32
    return %arg0, %c0_i32 : i32, i32
  }
}

</mosaic_0001>

<llo_original>
// kernel: receiver1d_forward.1
$region0: #{receiver1d_forward.1}
  #allocation0 [shape = 'u32[]', space=smem, size = 0x4, offset = 0x4, fixed_abs, tag = 'smem constant byte address 0x4 - core index']
  #allocation1 [shape = 'u32[72,128]{1,0:T(1,128)}', space=vmem, size = 0x9000, scoped, tag = 'internal scratch']
  %s0 = inlined_call_operand.vmem [shape: f32[8,128], index: 0, kind: input, shape index: {}]
  %s1 = inlined_call_operand.hbm [shape: f32[128,128], index: 1, kind: input, shape index: {}]
  %s2 = inlined_call_operand.vmem [shape: f32[8,128], index: 2, kind: output, shape index: {}]
  %s3 = sld [smem:[#allocation0]]
  $region22: #{receiver1d_forward.1} parent=0
    _
  %s5 = ssub.s32 1, %s3
  %s6 = scalar_select 0, %s5, %s3
  $region1: #{receiver1d_forward.1} parent=0
    #allocation2 [shape = 'u8[65536]{0}', space=vmem, size = 0x10000, scoped, tag = 'input window, operand 1, single buffered']
    #allocation3 [shape = 's32[1]{0}', space=sflag, size = 0x4, scoped, tag = 'scoped memory for receiver1d_forward.1']
    %7 = vsyncpa [#allocation3], 0
    // Predicated region
    $region2: #{receiver1d_forward.1} parent=1 // pred_check
      _
    $region3: #{receiver1d_forward.1} parent=1 // pred_check_branch
      %9 = sbr.rel (0) target = $region5
    $region4: #{receiver1d_forward.1} parent=1 // pred_region
      _
    $region5: #{receiver1d_forward.1} parent=1 // pred_fallthru
      _
    // Predicated region
    $region6: #{receiver1d_forward.1} parent=1 // pred_check
      _
    $region7: #{receiver1d_forward.1} parent=1 // pred_check_branch
      %11 = sbr.rel (0) target = $region9
    $region8: #{receiver1d_forward.1} parent=1 // pred_region
      %13 = vsyncadd [#allocation3], 0
      %s14 = sshll.u32 %s1, 4
      %s15 = int_to_ptr.hbm [resolvable:$true] %s14
      %s16 = sshll.u32 [#allocation2], 4
      %s17 = int_to_ptr.vmem [resolvable:$true] %s16
      %22 = dma.hbm_to_vmem [thread:$0]  %s15, 2048, %s17, [#allocation3], 128, 128, 8
    $region9: #{receiver1d_forward.1} parent=1 // pred_fallthru
      _
    // Predicated region
    $region10: #{receiver1d_forward.1} parent=1 // pred_check
      _
    $region11: #{receiver1d_forward.1} parent=1 // pred_check_branch
      %24 = sbr.rel (0) target = $region13
    $region12: #{receiver1d_forward.1} parent=1 // pred_region
      %26 = dma.done [#allocation3], 2048
    $region13: #{receiver1d_forward.1} parent=1 // pred_fallthru
      _
    %v27 = vld [vmem:[%s0] sm:$0xff]
    %v28 = vld [vmem:[#allocation2] sm:$0xff]
    %v29 = vld [vmem:[#allocation2 + $0x8] sm:$0xff]
    %v30 = vld [vmem:[#allocation2 + $0x10] sm:$0xff]
    %v31 = vld [vmem:[#allocation2 + $0x18] sm:$0xff]
    %v32 = vld [vmem:[#allocation2 + $0x20] sm:$0xff]
    %v33 = vld [vmem:[#allocation2 + $0x28] sm:$0xff]
    %v34 = vld [vmem:[#allocation2 + $0x30] sm:$0xff]
    %v35 = vld [vmem:[#allocation2 + $0x38] sm:$0xff]
    %v36 = vld [vmem:[#allocation2 + $0x40] sm:$0xff]
    %v37 = vld [vmem:[#allocation2 + $0x48] sm:$0xff]
    %v38 = vld [vmem:[#allocation2 + $0x50] sm:$0xff]
    %v39 = vld [vmem:[#allocation2 + $0x58] sm:$0xff]
    %v40 = vld [vmem:[#allocation2 + $0x60] sm:$0xff]
    %v41 = vld [vmem:[#allocation2 + $0x68] sm:$0xff]
    %v42 = vld [vmem:[#allocation2 + $0x70] sm:$0xff]
    %v43 = vld [vmem:[#allocation2 + $0x78] sm:$0xff]
    %44 = vmatpush.msra.mxu0 %v43
    %45 = vmatpush.msra.mxu0 %v42
    %46 = vmatpush.msra.mxu0 %v41
    %47 = vmatpush.msra.mxu0 %v40
    %48 = vmatpush.msra.mxu0 %v39
    %49 = vmatpush.msra.mxu0 %v38
    %50 = vmatpush.msra.mxu0 %v37
    %51 = vmatpush.msra.mxu0 %v36
    %52 = vmatpush.msra.mxu0 %v35
    %53 = vmatpush.msra.mxu0 %v34
    %54 = vmatpush.msra.mxu0 %v33
    %55 = vmatpush.msra.mxu0 %v32
    %56 = vmatpush.msra.mxu0 %v31
    %57 = vmatpush.msra.mxu0 %v30
    %58 = vmatpush.msra.mxu0 %v29
    %59 = vmatpush.msra.mxu0 %v28
    %60 = vmatmul.f32.gmra.mxu0 %v27
    %v61 = vpop.f32.mrf.mxu0
    %v62 = vadd.f32 0.0, %v61
    %63 = vdwg.mxu0
    %64 = vst [vmem:[%s2] sm:$0xff] %v62
    // Predicated region
    $region14: #{receiver1d_forward.1} parent=1 // pred_check
      _
    $region15: #{receiver1d_forward.1} parent=1 // pred_check_branch
      %66 = sbr.rel (0) target = $region17
    $region16: #{receiver1d_forward.1} parent=1 // pred_region
      _
    $region17: #{receiver1d_forward.1} parent=1 // pred_fallthru
      _
    // Predicated region
    $region18: #{receiver1d_forward.1} parent=1 // pred_check
      _
    $region19: #{receiver1d_forward.1} parent=1 // pred_check_branch
      %68 = sbr.rel (0) target = $region21
    $region20: #{receiver1d_forward.1} parent=1 // pred_region
      _
    $region21: #{receiver1d_forward.1} parent=1 // pred_fallthru
      _
    %69 = vsyncpa [#allocation3], 1

</llo_original>
